<compile_context>
chip_gen: v7x
topology: tpu7x:2x2x1
jax: 0.10.0
libtpu: 0.0.40
codegen_flags: <defaults>
</compile_context>

<pallas_src>
import jax
import jax.numpy as jnp
from jax.experimental import pallas as pl
from jax.experimental.pallas import tpu as pltpu


def _fused_linear_kernel(x_ref, w_ref, b_ref, o_ref):
    """y = x @ W_eff + b_eff.  One MXU pass, bias add on the VPU.

    The problem is ~hundreds of FLOPs, so the whole point of this kernel shape
    is minimal fixed cost: 3 operands, no grid, no pipelining machinery.
    """
    o_ref[...] = (
        jnp.dot(x_ref[...], w_ref[...], preferred_element_type=jnp.float32)
        + b_ref[...]
    ).astype(o_ref.dtype)


def fuse_linear_chain(params):
    """Collapse a list of (W, b) PyTorch-layout Linear params (W: [out, in],
    b: [out]) with no interleaved nonlinearity into one (W_eff, b_eff).

    Done ONCE at parameter-prep time (outside the jitted hot path), so the
    per-call forward launches exactly one pallas_call and nothing else.
    """
    w_eff = None
    b_eff = None
    for w, b in params:
        wt = jnp.asarray(w, jnp.float32).T                # (in, out)
        bb = jnp.asarray(b, jnp.float32).reshape(1, -1)   # (1, out) for 2-D bcast
        if w_eff is None:
            w_eff, b_eff = wt, bb
        else:
            w_eff = w_eff @ wt
            b_eff = b_eff @ wt + bb
    return w_eff, b_eff


@jax.jit
def my_module_forward(x, w_eff, b_eff):
    """Forward pass of MyModule given the pre-fused effective weight/bias."""
    batch = x.shape[0]
    out_features = w_eff.shape[1]

    # Full-array blocks, everything pinned in VMEM; no grid -> no per-step
    # pipeline prologue/epilogue or double-buffering for a single-step problem.
    full_spec = pl.BlockSpec(memory_space=pltpu.VMEM)

    return pl.pallas_call(
        _fused_linear_kernel,
        out_shape=jax.ShapeDtypeStruct((batch, out_features), x.dtype),
        in_specs=[full_spec, full_spec, full_spec],
        out_specs=full_spec,
    )(x, w_eff, b_eff)


def init_linear_params(key, in_features, out_features):
    """Deterministic init mimicking torch.nn.Linear default (uniform ±1/sqrt(in))."""
    kw, kb = jax.random.split(key)
    bound = 1.0 / (in_features ** 0.5)
    w = jax.random.uniform(kw, (out_features, in_features), jnp.float32,
                           minval=-bound, maxval=bound)
    b = jax.random.uniform(kb, (out_features,), jnp.float32,
                           minval=-bound, maxval=bound)
    return w, b


def reference_forward(x, params):
    """Pure-JAX reference: the literal 5-layer chain in PyTorch layout."""
    h = x
    for w, b in params:
        h = h @ w.T + b
    return h


if __name__ == "__main__":
    key = jax.random.PRNGKey(0)
    keys = jax.random.split(key, 6)

    # 5 Linear(4, 4) layers: mlp_1.{linear1,linear2}, mlp_2.{linear1,linear2}, output
    params = [init_linear_params(keys[i], 4, 4) for i in range(5)]

    x = jax.random.normal(keys[5], (8, 4), dtype=jnp.float32)

    # One-time parameter fusion (outside the per-call hot path).
    w_eff, b_eff = fuse_linear_chain(params)
    w_eff = jax.block_until_ready(w_eff)
    b_eff = jax.block_until_ready(b_eff)

    out = my_module_forward(x, w_eff, b_eff)
    out = jax.block_until_ready(out)

    ref = reference_forward(x, params)
    assert out.shape == (8, 4)
    assert jnp.allclose(out, ref, atol=1e-4, rtol=1e-4), \
        "mismatch vs. pure-JAX 5-layer reference"

    print("KERNEL_OK")
</pallas_src>

<mosaic_0001>
module attributes {stable_mosaic.version = 11 : i64} {
  func.func @_fused_linear_kernel(%arg0: memref<8x4xf32, #tpu.memory_space<vmem>>, %arg1: memref<4x4xf32, #tpu.memory_space<vmem>>, %arg2: memref<1x4xf32, #tpu.memory_space<vmem>>, %arg3: memref<8x4xf32, #tpu.memory_space<vmem>>) attributes {dimension_semantics = [], scalar_prefetch = 0 : i64, scratch_operands = 0 : i64, tpu.core_type = #tpu.core_type<tc>} {
    %c0 = arith.constant 0 : index
    %c0_0 = arith.constant 0 : index
    %0 = vector.load %arg0[%c0, %c0_0] : memref<8x4xf32, #tpu.memory_space<vmem>>, vector<8x4xf32>
    %c0_1 = arith.constant 0 : index
    %c0_2 = arith.constant 0 : index
    %1 = vector.load %arg1[%c0_1, %c0_2] : memref<4x4xf32, #tpu.memory_space<vmem>>, vector<4x4xf32>
    %cst = arith.constant dense<0.000000e+00> : vector<8x4xf32>
    %2 = tpu.matmul %0, %1, %cst {dimension_numbers = #tpu.dot_dimension_numbers<[1], [0], [0], [1], [0, 0, 1, 1], [], []>} : vector<8x4xf32>, vector<4x4xf32>, vector<8x4xf32> -> vector<8x4xf32>
    %c0_3 = arith.constant 0 : index
    %c0_4 = arith.constant 0 : index
    %3 = vector.load %arg2[%c0_3, %c0_4] : memref<1x4xf32, #tpu.memory_space<vmem>>, vector<1x4xf32>
    %4 = vector.broadcast %3 : vector<1x4xf32> to vector<8x4xf32>
    %5 = arith.addf %2, %4 : vector<8x4xf32>
    %c0_5 = arith.constant 0 : index
    %c0_6 = arith.constant 0 : index
    %6 = vector.load %arg3[%c0_5, %c0_6] : memref<8x4xf32, #tpu.memory_space<vmem>>, vector<8x4xf32>
    tpu.vector_store %arg3[%c0_5, %c0_6], %5 {strides = array<i32>} : memref<8x4xf32, #tpu.memory_space<vmem>>, vector<8x4xf32>,
    return
  }
}

</mosaic_0001>

<llo_original>
// kernel: my_module_forward.1
$region0: #{my_module_forward.1}
  #allocation0 [shape = 'u32[]', space=smem, size = 0x4, offset = 0x4, fixed_abs, tag = 'smem constant byte address 0x4 - core index']
  #allocation1 [shape = 'u32[144,128]{1,0:T(1,128)}', space=vmem, size = 0x12000, scoped, tag = 'internal scratch']
  %s0 = inlined_call_operand.vmem [shape: f32[8,4], index: 0, kind: input, shape index: {}]
  %s1 = inlined_call_operand.vmem [shape: f32[4,4], index: 1, kind: input, shape index: {}]
  %s2 = inlined_call_operand.vmem [shape: f32[1,4], index: 2, kind: input, shape index: {}]
  %s3 = inlined_call_operand.vmem [shape: f32[8,4], index: 3, kind: output, shape index: {}]
  %s4 = sld [smem:[#allocation0]]
  $region22: #{my_module_forward.1} parent=0
    _
  %s6 = ssub.s32 1, %s4
  %s7 = scalar_select 0, %s6, %s4
  // Predicated region
  $region2: #{my_module_forward.1} parent=0 // pred_check
    _
  $region3: #{my_module_forward.1} parent=0 // pred_check_branch
    %9 = sbr.rel (0) target = $region5
  $region4: #{my_module_forward.1} parent=0 // pred_region
    _
  $region5: #{my_module_forward.1} parent=0 // pred_fallthru
    _
  // Predicated region
  $region6: #{my_module_forward.1} parent=0 // pred_check
    _
  $region7: #{my_module_forward.1} parent=0 // pred_check_branch
    %11 = sbr.rel (0) target = $region9
  $region8: #{my_module_forward.1} parent=0 // pred_region
    _
  $region9: #{my_module_forward.1} parent=0 // pred_fallthru
    _
  // Predicated region
  $region10: #{my_module_forward.1} parent=0 // pred_check
    _
  $region11: #{my_module_forward.1} parent=0 // pred_check_branch
    %13 = sbr.rel (0) target = $region13
  $region12: #{my_module_forward.1} parent=0 // pred_region
    _
  $region13: #{my_module_forward.1} parent=0 // pred_fallthru
    _
  %v14 = vld [vmem:[%s0] sm:$0xff]
  %v15 = vld [vmem:[%s1] sm:$0xf]
  %v16 = vld [vmem:[%s2] sm:$0x1]
  %v18 = vlaneseq
  %v19 = vshrl.u32 %v18, 7
  %v20 = vsub.s32 0, %v19
  %v21 = vrot.slane %v16, %v20
  %vm23 = vcmask 31744
  %v25 = vsel %vm23, %v14, 0
  %vm27 = vcmask 1043456
  %v29 = vsel %vm27, %v15, 0
  %31 = vmatprep.subr.mxu0 0.0
  %32 = vmatpush1.msra.mxu0 %v29
  %33 = vmatprep.subr.mxu0 0.0
  %34 = vmatpush1.msra.mxu0 0.0
  %35 = vmatprep.subr.mxu0 0.0
  %36 = vmatpush1.msra.mxu0 0.0
  %37 = vmatprep.subr.mxu0 0.0
  %38 = vmatpush1.msra.mxu0 0.0
  %39 = vmatprep.subr.mxu0 0.0
  %40 = vmatpush1.msra.mxu0 0.0
  %41 = vmatprep.subr.mxu0 0.0
  %42 = vmatpush1.msra.mxu0 0.0
  %43 = vmatprep.subr.mxu0 0.0
  %44 = vmatpush1.msra.mxu0 0.0
  %45 = vmatprep.subr.mxu0 0.0
  %46 = vmatpush1.msra.mxu0 0.0
  %47 = vmatprep.subr.mxu0 0.0
  %48 = vmatpush1.msra.mxu0 0.0
  %49 = vmatprep.subr.mxu0 0.0
  %50 = vmatpush1.msra.mxu0 0.0
  %51 = vmatprep.subr.mxu0 0.0
  %52 = vmatpush1.msra.mxu0 0.0
  %53 = vmatprep.subr.mxu0 0.0
  %54 = vmatpush1.msra.mxu0 0.0
  %55 = vmatprep.subr.mxu0 0.0
  %56 = vmatpush1.msra.mxu0 0.0
  %57 = vmatprep.subr.mxu0 0.0
  %58 = vmatpush1.msra.mxu0 0.0
  %59 = vmatprep.subr.mxu0 0.0
  %60 = vmatpush1.msra.mxu0 0.0
  %61 = vmatprep.subr.mxu0 0.0
  %62 = vmatpush1.msra.mxu0 0.0
  %63 = vmatprep.subr.mxu0 0.0
  %64 = vmatpush1.msra.mxu0 0.0
  %65 = vmatprep.subr.mxu0 0.0
  %66 = vmatpush1.msra.mxu0 0.0
  %67 = vmatprep.subr.mxu0 0.0
  %68 = vmatpush1.msra.mxu0 0.0
  %69 = vmatprep.subr.mxu0 0.0
  %70 = vmatpush1.msra.mxu0 0.0
  %71 = vmatprep.subr.mxu0 0.0
  %72 = vmatpush1.msra.mxu0 0.0
  %73 = vmatprep.subr.mxu0 0.0
  %74 = vmatpush1.msra.mxu0 0.0
  %75 = vmatprep.subr.mxu0 0.0
  %76 = vmatpush1.msra.mxu0 0.0
  %77 = vmatprep.subr.mxu0 0.0
  %78 = vmatpush1.msra.mxu0 0.0
  %79 = vmatprep.subr.mxu0 0.0
  %80 = vmatpush1.msra.mxu0 0.0
  %81 = vmatprep.subr.mxu0 0.0
  %82 = vmatpush1.msra.mxu0 0.0
  %83 = vmatprep.subr.mxu0 0.0
  %84 = vmatpush1.msra.mxu0 0.0
  %85 = vmatprep.subr.mxu0 0.0
  %86 = vmatpush1.msra.mxu0 0.0
  %87 = vmatprep.subr.mxu0 0.0
  %88 = vmatpush1.msra.mxu0 0.0
  %89 = vmatprep.subr.mxu0 0.0
  %90 = vmatpush1.msra.mxu0 0.0
  %91 = vmatprep.subr.mxu0 0.0
  %92 = vmatpush1.msra.mxu0 0.0
  %93 = vmatprep.subr.mxu0 0.0
  %94 = vmatpush1.msra.mxu0 0.0
  %95 = vmatprep.mubr.f32.mxu0 0.0
  %96 = vmatmul.mubr.f32.gmra.mrb[0].mxu0 %v25
  %v97 = vpop.f32.mrb[0].mxu0
  %v98 = vadd.f32 %v21, %v97
  %v99 = vpop.f32.mrb[0].mxu0
  %100 = vdwg.mxu0
  %101 = vst.msk [vmem:[%s3] sm:$0xff] %vm23, %v98
  // Predicated region
  $region14: #{my_module_forward.1} parent=0 // pred_check
    _
  $region15: #{my_module_forward.1} parent=0 // pred_check_branch
    %103 = sbr.rel (0) target = $region17
  $region16: #{my_module_forward.1} parent=0 // pred_region
    _
  $region17: #{my_module_forward.1} parent=0 // pred_fallthru
    _
  // Predicated region
  $region18: #{my_module_forward.1} parent=0 // pred_check
    _
  $region19: #{my_module_forward.1} parent=0 // pred_check_branch
    %105 = sbr.rel (0) target = $region21
  $region20: #{my_module_forward.1} parent=0 // pred_region
    _
  $region21: #{my_module_forward.1} parent=0 // pred_fallthru
    _

</llo_original>
